<compile_context>
chip_gen: v7x
topology: tpu7x:2x2x1
jax: 0.10.0
libtpu: 0.0.40
codegen_flags: <defaults>
</compile_context>

<pallas_src>
import jax
import jax.numpy as jnp
from jax import lax
from jax.experimental import pallas as pl
from jax.experimental.pallas import tpu as pltpu


# ----------------------------------------------------------------------------
# Fused Inception kernel (per image)
# ----------------------------------------------------------------------------

def _make_inception_kernel(H, W, cfg):
    (cin, ch1x1, ch3x3red, ch3x3, ch5x5red, ch5x5, pool_proj) = cfg
    HW = H * W
    cred = ch3x3red + ch5x5red
    c33 = ch3x3 + ch5x5
    c_pw = ch1x1 + ch3x3red + ch5x5red + pool_proj
    PAD = 128                      # lane padding (aligned) around flat pixels
    assert PAD >= W + 1

    def kernel(x_ref, wx_ref, wp_ref, bpw_ref, w33_ref, b33_ref, col_ref,
               o_ref):
        x = x_ref[0]               # (cin, HW): channels in sublanes, pixels in lanes
        col = col_ref[...]         # (1, HW) float32: pixel column index j = p % W

        def shifted_taps(a, fill):
            # 9 copies of `a` shifted by (dy, dx) over the 2-D pixel grid with
            # `fill` outside the image (0 for conv padding, -inf for max-pool).
            c = a.shape[0]
            pad = jnp.full((c, PAD), fill, a.dtype)
            apad = jnp.concatenate([pad, a, pad], axis=1)    # lane-aligned concat
            out = []
            for dy in (-1, 0, 1):
                for dx in (-1, 0, 1):
                    off = PAD + dy * W + dx
                    t = apad[:, off:off + HW]
                    if dx == 1:          # neighbour column j+1 must exist
                        t = jnp.where(col < (W - 1), t, fill)
                    elif dx == -1:       # neighbour column j-1 must exist
                        t = jnp.where(col >= 1, t, fill)
                    out.append(t)
            return out

        # ---- branch4 max-pool (3x3, stride 1, pad 1) ------------------------
        ptaps = shifted_taps(x, -jnp.inf)
        pooled = ptaps[0]
        for t in ptaps[1:]:
            pooled = jnp.maximum(pooled, t)

        # ---- all four 1x1 convs fused into one (c_pw, HW) result ------------
        # rows of y_pw: [branch1 | branch2-reduce | branch3-reduce | branch4]
        y_pw = (jnp.dot(wx_ref[...], x, preferred_element_type=jnp.float32) +
                jnp.dot(wp_ref[...], pooled,
                        preferred_element_type=jnp.float32))
        y_pw = jnp.maximum(y_pw + bpw_ref[...], 0.0)         # shift + ReLU

        # ---- branch2 + branch3 3x3 convs: im2col + one block-diag matmul ----
        red = y_pw[ch1x1:ch1x1 + cred]                       # (cred, HW)
        cols = jnp.concatenate(shifted_taps(red, 0.0), axis=0)   # (9*cred, HW)
        y33 = jnp.dot(w33_ref[...], cols, preferred_element_type=jnp.float32)
        y33 = jnp.maximum(y33 + b33_ref[...], 0.0)           # (c33, HW)

        # ---- write the channel-concatenated output (lane-dense stores) ------
        o_ref[0, 0:ch1x1, :] = y_pw[0:ch1x1]                           # branch1
        o_ref[0, ch1x1:ch1x1 + c33, :] = y33                           # branch2,3
        o_ref[0, ch1x1 + c33:ch1x1 + c33 + pool_proj, :] = (           # branch4
            y_pw[c_pw - pool_proj:c_pw])

    return kernel


def inception_forward(x_nchw, fused):
    """Forward of the Inception block. Input/output NCHW (matches PyTorch)."""
    N, cin, H, W = x_nchw.shape
    HW = H * W
    cfg = fused["cfg"]
    (_, ch1x1, ch3x3red, ch3x3, ch5x5red, ch5x5, pool_proj) = cfg
    cred = ch3x3red + ch5x5red
    c33 = ch3x3 + ch5x5
    c_pw = ch1x1 + ch3x3red + ch5x5red + pool_proj
    c_tot = ch1x1 + ch3x3 + ch5x5 + pool_proj

    x = x_nchw.reshape(N, cin, HW)                    # free reshape, stays NCHW
    col = (jnp.arange(HW, dtype=jnp.int32) % W).astype(jnp.float32)
    col = col.reshape(1, HW)

    kernel = _make_inception_kernel(H, W, cfg)
    out = pl.pallas_call(
        kernel,
        out_shape=jax.ShapeDtypeStruct((N, c_tot, HW), jnp.float32),
        grid=(N,),
        in_specs=[
            pl.BlockSpec((1, cin, HW), lambda n: (n, 0, 0)),
            pl.BlockSpec((c_pw, cin), lambda n: (0, 0)),
            pl.BlockSpec((c_pw, cin), lambda n: (0, 0)),
            pl.BlockSpec((c_pw, 1), lambda n: (0, 0)),
            pl.BlockSpec((c33, 9 * cred), lambda n: (0, 0)),
            pl.BlockSpec((c33, 1), lambda n: (0, 0)),
            pl.BlockSpec((1, HW), lambda n: (0, 0)),
        ],
        out_specs=pl.BlockSpec((1, c_tot, HW), lambda n: (n, 0, 0)),
        compiler_params=pltpu.CompilerParams(
            dimension_semantics=("parallel",)),
    )(x, fused["w_pw_x"], fused["w_pw_pool"], fused["b_pw"],
      fused["w33"], fused["b33"], col)
    return out.reshape(N, c_tot, H, W)


# ----------------------------------------------------------------------------
# Host-side parameter construction / fusion (BN folded into weights)
# ----------------------------------------------------------------------------

def make_conv_bn(key, cin, cout, ksize):
    kw, kg, kb, km, kv = jax.random.split(key, 5)
    if ksize == 1:
        w = 0.1 * jax.random.normal(kw, (cin, cout), jnp.float32)
    else:
        w = 0.1 * jax.random.normal(kw, (ksize, ksize, cin, cout), jnp.float32)
    gamma = 1.0 + 0.1 * jax.random.normal(kg, (cout,), jnp.float32)
    beta = 0.1 * jax.random.normal(kb, (cout,), jnp.float32)
    running_mean = 0.1 * jax.random.normal(km, (cout,), jnp.float32)
    running_var = 0.5 + jax.random.uniform(kv, (cout,), jnp.float32)
    scale = gamma / jnp.sqrt(running_var + 1e-3)      # BatchNorm eps = 0.001
    shift = beta - running_mean * scale
    return w, scale, shift


def build_fused_params(params, cfg):
    (cin, ch1x1, ch3x3red, ch3x3, ch5x5red, ch5x5, pool_proj) = cfg
    c_pw = ch1x1 + ch3x3red + ch5x5red + pool_proj
    cred = ch3x3red + ch5x5red
    c33 = ch3x3 + ch5x5

    w1, s1, b1 = params["branch1"]
    w2r, s2r, b2r = params["branch2_red"]
    w2c, s2c, b2c = params["branch2_conv"]
    w3r, s3r, b3r = params["branch3_red"]
    w3c, s3c, b3c = params["branch3_conv"]
    w4, s4, b4 = params["branch4"]

    def fold1x1(w, s):            # (cin, cout) -> BN-folded (cout, cin)
        return (w * s[None, :]).T

    # 1x1 convs: one fused weight per source (x / pooled-x), shared bias.
    w_pw_x = jnp.zeros((c_pw, cin), jnp.float32)
    w_pw_p = jnp.zeros((c_pw, cin), jnp.float32)
    r = 0
    w_pw_x = w_pw_x.at[r:r + ch1x1].set(fold1x1(w1, s1)); r += ch1x1
    w_pw_x = w_pw_x.at[r:r + ch3x3red].set(fold1x1(w2r, s2r)); r += ch3x3red
    w_pw_x = w_pw_x.at[r:r + ch5x5red].set(fold1x1(w3r, s3r)); r += ch5x5red
    w_pw_p = w_pw_p.at[r:r + pool_proj].set(fold1x1(w4, s4))
    b_pw = jnp.concatenate([b1, b2r, b3r, b4]).reshape(c_pw, 1)

    # 3x3 convs: block-diagonal im2col weight (c33, 9*cred); tap order matches
    # the kernel's (dy, dx) loop, i.e. tap t = (ky)*3 + (kx).
    w2cf = w2c * s2c[None, None, None, :]
    w3cf = w3c * s3c[None, None, None, :]
    w33 = jnp.zeros((c33, 9 * cred), jnp.float32)
    for ky in range(3):
        for kx in range(3):
            t = ky * 3 + kx
            w33 = w33.at[0:ch3x3, t * cred:t * cred + ch3x3red].set(
                w2cf[ky, kx].T)
            w33 = w33.at[ch3x3:, t * cred + ch3x3red:(t + 1) * cred].set(
                w3cf[ky, kx].T)
    b33 = jnp.concatenate([b2c, b3c]).reshape(c33, 1)

    return {"cfg": cfg, "w_pw_x": w_pw_x, "w_pw_pool": w_pw_p, "b_pw": b_pw,
            "w33": w33, "b33": b33}


# ----------------------------------------------------------------------------
# Pure-JAX reference (unfused weights, for verification)
# ----------------------------------------------------------------------------

def _ref_conv_bn_relu(x, w_hwio, scale, shift, pad):
    y = lax.conv_general_dilated(
        x, w_hwio, window_strides=(1, 1), padding=pad,
        dimension_numbers=("NHWC", "HWIO", "NHWC"))
    return jnp.maximum(y * scale + shift, 0.0)


def reference_forward(x_nchw, params):
    x = jnp.transpose(x_nchw, (0, 2, 3, 1))

    def as_hwio(w):
        return w.reshape(1, 1, *w.shape) if w.ndim == 2 else w

    b1 = _ref_conv_bn_relu(x, as_hwio(params["branch1"][0]),
                           params["branch1"][1], params["branch1"][2],
                           [(0, 0), (0, 0)])
    b2 = _ref_conv_bn_relu(x, as_hwio(params["branch2_red"][0]),
                           params["branch2_red"][1], params["branch2_red"][2],
                           [(0, 0), (0, 0)])
    b2 = _ref_conv_bn_relu(b2, params["branch2_conv"][0],
                           params["branch2_conv"][1], params["branch2_conv"][2],
                           [(1, 1), (1, 1)])
    b3 = _ref_conv_bn_relu(x, as_hwio(params["branch3_red"][0]),
                           params["branch3_red"][1], params["branch3_red"][2],
                           [(0, 0), (0, 0)])
    b3 = _ref_conv_bn_relu(b3, params["branch3_conv"][0],
                           params["branch3_conv"][1], params["branch3_conv"][2],
                           [(1, 1), (1, 1)])
    pooled = lax.reduce_window(
        x, -jnp.inf, lax.max, (1, 3, 3, 1), (1, 1, 1, 1),
        [(0, 0), (1, 1), (1, 1), (0, 0)])
    b4 = _ref_conv_bn_relu(pooled, as_hwio(params["branch4"][0]),
                           params["branch4"][1], params["branch4"][2],
                           [(0, 0), (0, 0)])
    out = jnp.concatenate([b1, b2, b3, b4], axis=-1)
    return jnp.transpose(out, (0, 3, 1, 2))


# ----------------------------------------------------------------------------
# Main
# ----------------------------------------------------------------------------

if __name__ == "__main__":
    key = jax.random.PRNGKey(0)
    N, in_channels, H, W = 2, 4, 16, 16
    ch1x1, ch3x3red, ch3x3 = 8, 4, 8
    ch5x5red, ch5x5, pool_proj = 4, 8, 8
    cfg = (in_channels, ch1x1, ch3x3red, ch3x3, ch5x5red, ch5x5, pool_proj)

    keys = jax.random.split(key, 8)
    params = {
        "branch1":      make_conv_bn(keys[0], in_channels, ch1x1, 1),
        "branch2_red":  make_conv_bn(keys[1], in_channels, ch3x3red, 1),
        "branch2_conv": make_conv_bn(keys[2], ch3x3red, ch3x3, 3),
        "branch3_red":  make_conv_bn(keys[3], in_channels, ch5x5red, 1),
        "branch3_conv": make_conv_bn(keys[4], ch5x5red, ch5x5, 3),
        "branch4":      make_conv_bn(keys[5], in_channels, pool_proj, 1),
    }
    fused = build_fused_params(params, cfg)

    x = jax.random.normal(keys[6], (N, in_channels, H, W), jnp.float32)

    out = jax.block_until_ready(inception_forward(x, fused))

    expected_channels = ch1x1 + ch3x3 + ch5x5 + pool_proj
    assert out.shape == (N, expected_channels, H, W), out.shape

    ref = jax.block_until_ready(reference_forward(x, params))
    assert jnp.allclose(out, ref, rtol=1e-4, atol=1e-4), (
        float(jnp.max(jnp.abs(out - ref))))

    print("KERNEL_OK")
</pallas_src>

<mosaic_0001>
module attributes {stable_mosaic.version = 11 : i64} {
  func.func @kernel(%arg0: i32, %arg1: memref<1x4x256xf32, #tpu.memory_space<vmem>>, %arg2: memref<24x4xf32, #tpu.memory_space<vmem>>, %arg3: memref<24x4xf32, #tpu.memory_space<vmem>>, %arg4: memref<24x1xf32, #tpu.memory_space<vmem>>, %arg5: memref<16x72xf32, #tpu.memory_space<vmem>>, %arg6: memref<16x1xf32, #tpu.memory_space<vmem>>, %arg7: memref<1x256xf32, #tpu.memory_space<vmem>>, %arg8: memref<1x32x256xf32, #tpu.memory_space<vmem>>) attributes {dimension_semantics = [#tpu.dimension_semantics<parallel>], iteration_bounds = array<i64: 2>, scalar_prefetch = 0 : i64, scratch_operands = 0 : i64, tpu.core_type = #tpu.core_type<tc>, window_params = [{transform_indices = @transform_0, window_bounds = array<i64: 1, 4, 256>}, {pipeline_mode = #tpu.pipeline_mode<synchronous>, transform_indices = @transform_1, window_bounds = array<i64: 24, 4>}, {pipeline_mode = #tpu.pipeline_mode<synchronous>, transform_indices = @transform_2, window_bounds = array<i64: 24, 4>}, {pipeline_mode = #tpu.pipeline_mode<synchronous>, transform_indices = @transform_3, window_bounds = array<i64: 24, 1>}, {pipeline_mode = #tpu.pipeline_mode<synchronous>, transform_indices = @transform_4, window_bounds = array<i64: 16, 72>}, {pipeline_mode = #tpu.pipeline_mode<synchronous>, transform_indices = @transform_5, window_bounds = array<i64: 16, 1>}, {pipeline_mode = #tpu.pipeline_mode<synchronous>, transform_indices = @transform_6, window_bounds = array<i64: 1, 256>}, {transform_indices = @transform_7, window_bounds = array<i64: 1, 32, 256>}]} {
    %c0 = arith.constant 0 : index
    %c0_0 = arith.constant 0 : index
    %c0_1 = arith.constant 0 : index
    %0 = vector.load %arg1[%c0, %c0_0, %c0_1] : memref<1x4x256xf32, #tpu.memory_space<vmem>>, vector<1x4x256xf32>
    %1 = vector.shape_cast %0 : vector<1x4x256xf32> to vector<4x256xf32>
    %c0_2 = arith.constant 0 : index
    %c0_3 = arith.constant 0 : index
    %2 = vector.load %arg7[%c0_2, %c0_3] : memref<1x256xf32, #tpu.memory_space<vmem>>, vector<1x256xf32>
    %cst = arith.constant 0xFF800000 : f32
    %3 = vector.broadcast %cst : f32 to vector<4x128xf32>
    %4 = tpu.concatenate %3, %1, %3 in 1 : vector<4x128xf32>, vector<4x256xf32>, vector<4x128xf32> -> vector<4x512xf32>
    %5 = vector.extract_strided_slice %4 {offsets = [0, 111], sizes = [4, 256], strides = [1, 1]} : vector<4x512xf32> to vector<4x256xf32>
    %cst_4 = arith.constant 1.000000e+00 : f32
    %6 = vector.broadcast %cst_4 : f32 to vector<1x256xf32>
    %7 = arith.cmpf oge, %2, %6 : vector<1x256xf32>
    %cst_5 = arith.constant 0xFF800000 : f32
    %8 = vector.shape_cast %7 : vector<1x256xi1> to vector<1x256xi1>
    %9 = vector.broadcast %8 : vector<1x256xi1> to vector<4x256xi1>
    %10 = vector.broadcast %cst_5 : f32 to vector<4x256xf32>
    %11 = arith.select %9, %5, %10 : vector<4x256xi1>, vector<4x256xf32>
    %12 = vector.extract_strided_slice %4 {offsets = [0, 112], sizes = [4, 256], strides = [1, 1]} : vector<4x512xf32> to vector<4x256xf32>
    %13 = vector.extract_strided_slice %4 {offsets = [0, 113], sizes = [4, 256], strides = [1, 1]} : vector<4x512xf32> to vector<4x256xf32>
    %cst_6 = arith.constant 1.500000e+01 : f32
    %14 = vector.broadcast %cst_6 : f32 to vector<1x256xf32>
    %15 = arith.cmpf olt, %2, %14 : vector<1x256xf32>
    %cst_7 = arith.constant 0xFF800000 : f32
    %16 = vector.shape_cast %15 : vector<1x256xi1> to vector<1x256xi1>
    %17 = vector.broadcast %16 : vector<1x256xi1> to vector<4x256xi1>
    %18 = vector.broadcast %cst_7 : f32 to vector<4x256xf32>
    %19 = arith.select %17, %13, %18 : vector<4x256xi1>, vector<4x256xf32>
    %20 = vector.extract_strided_slice %4 {offsets = [0, 127], sizes = [4, 256], strides = [1, 1]} : vector<4x512xf32> to vector<4x256xf32>
    %cst_8 = arith.constant 1.000000e+00 : f32
    %21 = vector.broadcast %cst_8 : f32 to vector<1x256xf32>
    %22 = arith.cmpf oge, %2, %21 : vector<1x256xf32>
    %cst_9 = arith.constant 0xFF800000 : f32
    %23 = vector.shape_cast %22 : vector<1x256xi1> to vector<1x256xi1>
    %24 = vector.broadcast %23 : vector<1x256xi1> to vector<4x256xi1>
    %25 = vector.broadcast %cst_9 : f32 to vector<4x256xf32>
    %26 = arith.select %24, %20, %25 : vector<4x256xi1>, vector<4x256xf32>
    %27 = vector.extract_strided_slice %4 {offsets = [0, 128], sizes = [4, 256], strides = [1, 1]} : vector<4x512xf32> to vector<4x256xf32>
    %28 = vector.extract_strided_slice %4 {offsets = [0, 129], sizes = [4, 256], strides = [1, 1]} : vector<4x512xf32> to vector<4x256xf32>
    %cst_10 = arith.constant 1.500000e+01 : f32
    %29 = vector.broadcast %cst_10 : f32 to vector<1x256xf32>
    %30 = arith.cmpf olt, %2, %29 : vector<1x256xf32>
    %cst_11 = arith.constant 0xFF800000 : f32
    %31 = vector.shape_cast %30 : vector<1x256xi1> to vector<1x256xi1>
    %32 = vector.broadcast %31 : vector<1x256xi1> to vector<4x256xi1>
    %33 = vector.broadcast %cst_11 : f32 to vector<4x256xf32>
    %34 = arith.select %32, %28, %33 : vector<4x256xi1>, vector<4x256xf32>
    %35 = vector.extract_strided_slice %4 {offsets = [0, 143], sizes = [4, 256], strides = [1, 1]} : vector<4x512xf32> to vector<4x256xf32>
    %cst_12 = arith.constant 1.000000e+00 : f32
    %36 = vector.broadcast %cst_12 : f32 to vector<1x256xf32>
    %37 = arith.cmpf oge, %2, %36 : vector<1x256xf32>
    %cst_13 = arith.constant 0xFF800000 : f32
    %38 = vector.shape_cast %37 : vector<1x256xi1> to vector<1x256xi1>
    %39 = vector.broadcast %38 : vector<1x256xi1> to vector<4x256xi1>
    %40 = vector.broadcast %cst_13 : f32 to vector<4x256xf32>
    %41 = arith.select %39, %35, %40 : vector<4x256xi1>, vector<4x256xf32>
    %42 = vector.extract_strided_slice %4 {offsets = [0, 144], sizes = [4, 256], strides = [1, 1]} : vector<4x512xf32> to vector<4x256xf32>
    %43 = vector.extract_strided_slice %4 {offsets = [0, 145], sizes = [4, 256], strides = [1, 1]} : vector<4x512xf32> to vector<4x256xf32>
    %cst_14 = arith.constant 1.500000e+01 : f32
    %44 = vector.broadcast %cst_14 : f32 to vector<1x256xf32>
    %45 = arith.cmpf olt, %2, %44 : vector<1x256xf32>
    %cst_15 = arith.constant 0xFF800000 : f32
    %46 = vector.shape_cast %45 : vector<1x256xi1> to vector<1x256xi1>
    %47 = vector.broadcast %46 : vector<1x256xi1> to vector<4x256xi1>
    %48 = vector.broadcast %cst_15 : f32 to vector<4x256xf32>
    %49 = arith.select %47, %43, %48 : vector<4x256xi1>, vector<4x256xf32>
    %50 = arith.maximumf %11, %12 : vector<4x256xf32>
    %51 = arith.maximumf %50, %19 : vector<4x256xf32>
    %52 = arith.maximumf %51, %26 : vector<4x256xf32>
    %53 = arith.maximumf %52, %27 : vector<4x256xf32>
    %54 = arith.maximumf %53, %34 : vector<4x256xf32>
    %55 = arith.maximumf %54, %41 : vector<4x256xf32>
    %56 = arith.maximumf %55, %42 : vector<4x256xf32>
    %57 = arith.maximumf %56, %49 : vector<4x256xf32>
    %c0_16 = arith.constant 0 : index
    %c0_17 = arith.constant 0 : index
    %58 = vector.load %arg2[%c0_16, %c0_17] : memref<24x4xf32, #tpu.memory_space<vmem>>, vector<24x4xf32>
    %cst_18 = arith.constant dense<0.000000e+00> : vector<24x256xf32>
    %59 = tpu.matmul %58, %1, %cst_18 {dimension_numbers = #tpu.dot_dimension_numbers<[1], [0], [0], [1], [0, 0, 1, 1], [], []>} : vector<24x4xf32>, vector<4x256xf32>, vector<24x256xf32> -> vector<24x256xf32>
    %c0_19 = arith.constant 0 : index
    %c0_20 = arith.constant 0 : index
    %60 = vector.load %arg3[%c0_19, %c0_20] : memref<24x4xf32, #tpu.memory_space<vmem>>, vector<24x4xf32>
    %cst_21 = arith.constant dense<0.000000e+00> : vector<24x256xf32>
    %61 = tpu.matmul %60, %57, %cst_21 {dimension_numbers = #tpu.dot_dimension_numbers<[1], [0], [0], [1], [0, 0, 1, 1], [], []>} : vector<24x4xf32>, vector<4x256xf32>, vector<24x256xf32> -> vector<24x256xf32>
    %62 = arith.addf %59, %61 : vector<24x256xf32>
    %c0_22 = arith.constant 0 : index
    %c0_23 = arith.constant 0 : index
    %63 = vector.load %arg4[%c0_22, %c0_23] : memref<24x1xf32, #tpu.memory_space<vmem>>, vector<24x1xf32>
    %64 = vector.broadcast %63 : vector<24x1xf32> to vector<24x256xf32>
    %65 = arith.addf %62, %64 : vector<24x256xf32>
    %cst_24 = arith.constant 0.000000e+00 : f32
    %66 = vector.broadcast %cst_24 : f32 to vector<24x256xf32>
    %67 = arith.maximumf %65, %66 : vector<24x256xf32>
    %68 = vector.extract_strided_slice %67 {offsets = [8, 0], sizes = [8, 256], strides = [1, 1]} : vector<24x256xf32> to vector<8x256xf32>
    %cst_25 = arith.constant 0.000000e+00 : f32
    %69 = vector.broadcast %cst_25 : f32 to vector<8x128xf32>
    %70 = tpu.concatenate %69, %68, %69 in 1 : vector<8x128xf32>, vector<8x256xf32>, vector<8x128xf32> -> vector<8x512xf32>
    %71 = vector.extract_strided_slice %70 {offsets = [0, 111], sizes = [8, 256], strides = [1, 1]} : vector<8x512xf32> to vector<8x256xf32>
    %cst_26 = arith.constant 1.000000e+00 : f32
    %72 = vector.broadcast %cst_26 : f32 to vector<1x256xf32>
    %73 = arith.cmpf oge, %2, %72 : vector<1x256xf32>
    %cst_27 = arith.constant 0.000000e+00 : f32
    %74 = vector.shape_cast %73 : vector<1x256xi1> to vector<1x256xi1>
    %75 = vector.broadcast %74 : vector<1x256xi1> to vector<8x256xi1>
    %76 = vector.broadcast %cst_27 : f32 to vector<8x256xf32>
    %77 = arith.select %75, %71, %76 : vector<8x256xi1>, vector<8x256xf32>
    %78 = vector.extract_strided_slice %70 {offsets = [0, 112], sizes = [8, 256], strides = [1, 1]} : vector<8x512xf32> to vector<8x256xf32>
    %79 = vector.extract_strided_slice %70 {offsets = [0, 113], sizes = [8, 256], strides = [1, 1]} : vector<8x512xf32> to vector<8x256xf32>
    %cst_28 = arith.constant 1.500000e+01 : f32
    %80 = vector.broadcast %cst_28 : f32 to vector<1x256xf32>
    %81 = arith.cmpf olt, %2, %80 : vector<1x256xf32>
    %cst_29 = arith.constant 0.000000e+00 : f32
    %82 = vector.shape_cast %81 : vector<1x256xi1> to vector<1x256xi1>
    %83 = vector.broadcast %82 : vector<1x256xi1> to vector<8x256xi1>
    %84 = vector.broadcast %cst_29 : f32 to vector<8x256xf32>
    %85 = arith.select %83, %79, %84 : vector<8x256xi1>, vector<8x256xf32>
    %86 = vector.extract_strided_slice %70 {offsets = [0, 127], sizes = [8, 256], strides = [1, 1]} : vector<8x512xf32> to vector<8x256xf32>
    %cst_30 = arith.constant 1.000000e+00 : f32
    %87 = vector.broadcast %cst_30 : f32 to vector<1x256xf32>
    %88 = arith.cmpf oge, %2, %87 : vector<1x256xf32>
    %cst_31 = arith.constant 0.000000e+00 : f32
    %89 = vector.shape_cast %88 : vector<1x256xi1> to vector<1x256xi1>
    %90 = vector.broadcast %89 : vector<1x256xi1> to vector<8x256xi1>
    %91 = vector.broadcast %cst_31 : f32 to vector<8x256xf32>
    %92 = arith.select %90, %86, %91 : vector<8x256xi1>, vector<8x256xf32>
    %93 = vector.extract_strided_slice %70 {offsets = [0, 128], sizes = [8, 256], strides = [1, 1]} : vector<8x512xf32> to vector<8x256xf32>
    %94 = vector.extract_strided_slice %70 {offsets = [0, 129], sizes = [8, 256], strides = [1, 1]} : vector<8x512xf32> to vector<8x256xf32>
    %cst_32 = arith.constant 1.500000e+01 : f32
    %95 = vector.broadcast %cst_32 : f32 to vector<1x256xf32>
    %96 = arith.cmpf olt, %2, %95 : vector<1x256xf32>
    %cst_33 = arith.constant 0.000000e+00 : f32
    %97 = vector.shape_cast %96 : vector<1x256xi1> to vector<1x256xi1>
    %98 = vector.broadcast %97 : vector<1x256xi1> to vector<8x256xi1>
    %99 = vector.broadcast %cst_33 : f32 to vector<8x256xf32>
    %100 = arith.select %98, %94, %99 : vector<8x256xi1>, vector<8x256xf32>
    %101 = vector.extract_strided_slice %70 {offsets = [0, 143], sizes = [8, 256], strides = [1, 1]} : vector<8x512xf32> to vector<8x256xf32>
    %cst_34 = arith.constant 1.000000e+00 : f32
    %102 = vector.broadcast %cst_34 : f32 to vector<1x256xf32>
    %103 = arith.cmpf oge, %2, %102 : vector<1x256xf32>
    %cst_35 = arith.constant 0.000000e+00 : f32
    %104 = vector.shape_cast %103 : vector<1x256xi1> to vector<1x256xi1>
    %105 = vector.broadcast %104 : vector<1x256xi1> to vector<8x256xi1>
    %106 = vector.broadcast %cst_35 : f32 to vector<8x256xf32>
    %107 = arith.select %105, %101, %106 : vector<8x256xi1>, vector<8x256xf32>
    %108 = vector.extract_strided_slice %70 {offsets = [0, 144], sizes = [8, 256], strides = [1, 1]} : vector<8x512xf32> to vector<8x256xf32>
    %109 = vector.extract_strided_slice %70 {offsets = [0, 145], sizes = [8, 256], strides = [1, 1]} : vector<8x512xf32> to vector<8x256xf32>
    %cst_36 = arith.constant 1.500000e+01 : f32
    %110 = vector.broadcast %cst_36 : f32 to vector<1x256xf32>
    %111 = arith.cmpf olt, %2, %110 : vector<1x256xf32>
    %cst_37 = arith.constant 0.000000e+00 : f32
    %112 = vector.shape_cast %111 : vector<1x256xi1> to vector<1x256xi1>
    %113 = vector.broadcast %112 : vector<1x256xi1> to vector<8x256xi1>
    %114 = vector.broadcast %cst_37 : f32 to vector<8x256xf32>
    %115 = arith.select %113, %109, %114 : vector<8x256xi1>, vector<8x256xf32>
    %116 = tpu.concatenate %77, %78, %85, %92, %93, %100, %107, %108, %115 in 0 : vector<8x256xf32>, vector<8x256xf32>, vector<8x256xf32>, vector<8x256xf32>, vector<8x256xf32>, vector<8x256xf32>, vector<8x256xf32>, vector<8x256xf32>, vector<8x256xf32> -> vector<72x256xf32>
    %c0_38 = arith.constant 0 : index
    %c0_39 = arith.constant 0 : index
    %117 = vector.load %arg5[%c0_38, %c0_39] : memref<16x72xf32, #tpu.memory_space<vmem>>, vector<16x72xf32>
    %cst_40 = arith.constant dense<0.000000e+00> : vector<16x256xf32>
    %118 = tpu.matmul %117, %116, %cst_40 {dimension_numbers = #tpu.dot_dimension_numbers<[1], [0], [0], [1], [0, 0, 1, 1], [], []>} : vector<16x72xf32>, vector<72x256xf32>, vector<16x256xf32> -> vector<16x256xf32>
    %c0_41 = arith.constant 0 : index
    %c0_42 = arith.constant 0 : index
    %119 = vector.load %arg6[%c0_41, %c0_42] : memref<16x1xf32, #tpu.memory_space<vmem>>, vector<16x1xf32>
    %120 = vector.broadcast %119 : vector<16x1xf32> to vector<16x256xf32>
    %121 = arith.addf %118, %120 : vector<16x256xf32>
    %cst_43 = arith.constant 0.000000e+00 : f32
    %122 = vector.broadcast %cst_43 : f32 to vector<16x256xf32>
    %123 = arith.maximumf %121, %122 : vector<16x256xf32>
    %124 = vector.extract_strided_slice %67 {offsets = [0, 0], sizes = [8, 256], strides = [1, 1]} : vector<24x256xf32> to vector<8x256xf32>
    %c0_44 = arith.constant 0 : index
    %c0_45 = arith.constant 0 : index
    %c0_46 = arith.constant 0 : index
    %125 = vector.load %arg8[%c0_44, %c0_45, %c0_46] : memref<1x32x256xf32, #tpu.memory_space<vmem>>, vector<1x8x256xf32>
    %126 = vector.shape_cast %125 : vector<1x8x256xf32> to vector<8x256xf32>
    %127 = vector.shape_cast %124 : vector<8x256xf32> to vector<1x8x256xf32>
    tpu.vector_store %arg8[%c0_44, %c0_45, %c0_46], %127 {strides = array<i32>} : memref<1x32x256xf32, #tpu.memory_space<vmem>>, vector<1x8x256xf32>,
    %c0_47 = arith.constant 0 : index
    %c8 = arith.constant 8 : index
    %c0_48 = arith.constant 0 : index
    %128 = vector.load %arg8[%c0_47, %c8, %c0_48] : memref<1x32x256xf32, #tpu.memory_space<vmem>>, vector<1x16x256xf32>
    %129 = vector.shape_cast %128 : vector<1x16x256xf32> to vector<16x256xf32>
    %130 = vector.shape_cast %123 : vector<16x256xf32> to vector<1x16x256xf32>
    tpu.vector_store %arg8[%c0_47, %c8, %c0_48], %130 {strides = array<i32>} : memref<1x32x256xf32, #tpu.memory_space<vmem>>, vector<1x16x256xf32>,
    %131 = vector.extract_strided_slice %67 {offsets = [16, 0], sizes = [8, 256], strides = [1, 1]} : vector<24x256xf32> to vector<8x256xf32>
    %c0_49 = arith.constant 0 : index
    %c24 = arith.constant 24 : index
    %c0_50 = arith.constant 0 : index
    %132 = vector.load %arg8[%c0_49, %c24, %c0_50] : memref<1x32x256xf32, #tpu.memory_space<vmem>>, vector<1x8x256xf32>
    %133 = vector.shape_cast %132 : vector<1x8x256xf32> to vector<8x256xf32>
    %134 = vector.shape_cast %131 : vector<8x256xf32> to vector<1x8x256xf32>
    tpu.vector_store %arg8[%c0_49, %c24, %c0_50], %134 {strides = array<i32>} : memref<1x32x256xf32, #tpu.memory_space<vmem>>, vector<1x8x256xf32>,
    return
  }
  func.func @transform_0(%arg0: i32) -> (i32, i32, i32) {
    %c0_i32 = arith.constant 0 : i32
    %c0_i32_0 = arith.constant 0 : i32
    %c0_i32_1 = arith.constant 0 : i32
    return %arg0, %c0_i32, %c0_i32_0 : i32, i32, i32
  }
  func.func @transform_1(%arg0: i32) -> (i32, i32) {
    %c0_i32 = arith.constant 0 : i32
    %c0_i32_0 = arith.constant 0 : i32
    %c0_i32_1 = arith.constant 0 : i32
    return %c0_i32, %c0_i32_0 : i32, i32
  }
  func.func @transform_2(%arg0: i32) -> (i32, i32) {
    %c0_i32 = arith.constant 0 : i32
    %c0_i32_0 = arith.constant 0 : i32
    %c0_i32_1 = arith.constant 0 : i32
    return %c0_i32, %c0_i32_0 : i32, i32
  }
  func.func @transform_3(%arg0: i32) -> (i32, i32) {
    %c0_i32 = arith.constant 0 : i32
    %c0_i32_0 = arith.constant 0 : i32
    %c0_i32_1 = arith.constant 0 : i32
    return %c0_i32, %c0_i32_0 : i32, i32
  }
  func.func @transform_4(%arg0: i32) -> (i32, i32) {
    %c0_i32 = arith.constant 0 : i32
    %c0_i32_0 = arith.constant 0 : i32
    %c0_i32_1 = arith.constant 0 : i32
    return %c0_i32, %c0_i32_0 : i32, i32
  }
  func.func @transform_5(%arg0: i32) -> (i32, i32) {
    %c0_i32 = arith.constant 0 : i32
    %c0_i32_0 = arith.constant 0 : i32
    %c0_i32_1 = arith.constant 0 : i32
    return %c0_i32, %c0_i32_0 : i32, i32
  }
  func.func @transform_6(%arg0: i32) -> (i32, i32) {
    %c0_i32 = arith.constant 0 : i32
    %c0_i32_0 = arith.constant 0 : i32
    %c0_i32_1 = arith.constant 0 : i32
    return %c0_i32, %c0_i32_0 : i32, i32
  }
  func.func @transform_7(%arg0: i32) -> (i32, i32, i32) {
    %c0_i32 = arith.constant 0 : i32
    %c0_i32_0 = arith.constant 0 : i32
    %c0_i32_1 = arith.constant 0 : i32
    return %arg0, %c0_i32, %c0_i32_0 : i32, i32, i32
  }
}

</mosaic_0001>

<llo_original>
// kernel: tpu_custom_call.1
$region0: #{tpu_custom_call.1}
  #allocation0 [shape = 'u32[]', space=smem, size = 0x4, offset = 0x4, fixed_abs, tag = 'smem constant byte address 0x4 - core index']
  #allocation1 [shape = 'u32[144,128]{1,0:T(1,128)}', space=vmem, size = 0x12000, scoped, tag = 'internal scratch']
  %s0 = inlined_call_operand.vmem [shape: f32[2,4,256], index: 0, kind: input, shape index: {}]
  %s1 = inlined_call_operand.vmem [shape: f32[24,4], index: 1, kind: input, shape index: {}]
  %s2 = inlined_call_operand.vmem [shape: f32[24,4], index: 2, kind: input, shape index: {}]
  %s3 = inlined_call_operand.vmem [shape: f32[24,1], index: 3, kind: input, shape index: {}]
  %s4 = inlined_call_operand.vmem [shape: f32[16,72], index: 4, kind: input, shape index: {}]
  %s5 = inlined_call_operand.vmem [shape: f32[16,1], index: 5, kind: input, shape index: {}]
  %s6 = inlined_call_operand.vmem [shape: f32[1,256], index: 6, kind: input, shape index: {}]
  %s7 = inlined_call_operand.hbm [shape: f32[2,32,256], index: 7, kind: output, shape index: {}]
  %s8 = sld [smem:[#allocation0]]
  $region61: #{tpu_custom_call.1} parent=0
    _
  %s10 = ssub.s32 1, %s8
  %s11 = scalar_select 0, %s10, %s8
  $region1: #{tpu_custom_call.1} parent=0
    #allocation2 [shape = 'u8[65536]{0}', space=vmem, size = 0x10000, scoped, tag = 'output window, operand 0']
    #allocation3 [shape = 's32[2]{0}', space=sflag, size = 0x8, scoped, tag = 'scoped memory for tpu_custom_call.1']
    %12 = vsyncpa [#allocation3], 0
    %s13 = scalar_lea.sflag [#allocation3], 1
    %14 = vsyncpa %s13, 0
    loop: start=0, step=1, limit=4
    $region2: #{tpu_custom_call.1} parent=1 // loop_pre_header
      _
    $region3: #{tpu_custom_call.1} parent=1 // loop_header
      %s16 = sphi 0, %s20
      %p17 = scmp.ge.s32.totalorder %s16, 4
      %s26 = sphi 0, %s28
      %s29 = sphi 0, %s26
      %s30 = sphi 0, %s29
      %s46 = sphi 0, %s30
      %s50 = sphi 0, %s50
      %s52 = sphi 0, %s50
      %s53 = sphi 0, %s52
      %s67 = sphi 0, %s53
      %s71 = sphi 0, %s71
      %s73 = sphi 0, %s71
      %s74 = sphi 0, %s73
      %s88 = sphi 0, %s74
      %s92 = sphi 0, %s92
      %s94 = sphi 0, %s92
      %s95 = sphi 0, %s94
      %s109 = sphi 0, %s95
      %s113 = sphi 0, %s113
      %s115 = sphi 0, %s113
      %s116 = sphi 0, %s115
      %s130 = sphi 0, %s116
      %s134 = sphi 0, %s134
      %s136 = sphi 0, %s134
      %s137 = sphi 0, %s136
      %s151 = sphi 0, %s137
      %s155 = sphi 0, %s155
      %s157 = sphi 0, %s155
      %s158 = sphi 0, %s157
      %s172 = sphi 0, %s158
      %s178 = sphi 0, %s180
      %s181 = sphi 0, %s178
      %s182 = sphi 0, %s181
      %s198 = sphi 0, %s182
    $region4: #{tpu_custom_call.1} parent=1 // loop_header_branch
      %19 = sbr.rel (%p17) target = $region8
    $region5: #{tpu_custom_call.1} parent=1 // loop_body
      %s21 = ssub.s32 %s16, 1
      %s22 = ssub.s32 %s16, 2
      %s23 = sadd.s32 %s16, 1
      %s24 = ssub.s32 %s16, %s23
      %p25 = scmp.eq.s32.totalorder %s24, 0
      %s27 = sadd.s32 %s26, 1
      %s28 = scalar_select %p25, %s26, %s27
      %p31 = pneg %p25
      %p32 = scmp.eq.s32.totalorder %s16, 1
      %p33 = por %p31, %p32
      %p34 = scmp.ne.s32.totalorder %s26, %s29
      %p35 = scmp.eq.s32.totalorder %s16, 0
      %p36 = por %p34, %p35
      %p37 = scmp.ne.s32.totalorder %s26, %s29
      %p38 = scmp.eq.s32.totalorder %s21, 1
      %p39 = por %p37, %p38
      %p40 = scmp.ne.s32.totalorder %s29, %s30
      %p41 = scmp.eq.s32.totalorder %s21, 0
      %p42 = por %p40, %p41
      %p43 = scmp.ne.s32.totalorder %s29, %s30
      %p44 = scmp.eq.s32.totalorder %s22, 1
      %p45 = por %p43, %p44
      %p47 = scmp.ne.s32.totalorder %s30, %s46
      %p48 = scmp.eq.s32.totalorder %s22, 0
      %p49 = por %p47, %p48
      %s51 = sadd.s32 %s50, 1
      %p54 = scmp.eq.s32.totalorder %s16, 1
      %p55 = scmp.ne.s32.totalorder %s50, %s52
      %p56 = scmp.eq.s32.totalorder %s16, 0
      %p57 = por %p55, %p56
      %p58 = scmp.ne.s32.totalorder %s50, %s52
      %p59 = scmp.eq.s32.totalorder %s21, 1
      %p60 = por %p58, %p59
      %p61 = scmp.ne.s32.totalorder %s52, %s53
      %p62 = scmp.eq.s32.totalorder %s21, 0
      %p63 = por %p61, %p62
      %p64 = scmp.ne.s32.totalorder %s52, %s53
      %p65 = scmp.eq.s32.totalorder %s22, 1
      %p66 = por %p64, %p65
      %p68 = scmp.ne.s32.totalorder %s53, %s67
      %p69 = scmp.eq.s32.totalorder %s22, 0
      %p70 = por %p68, %p69
      %s72 = sadd.s32 %s71, 1
      %p75 = scmp.eq.s32.totalorder %s16, 1
      %p76 = scmp.ne.s32.totalorder %s71, %s73
      %p77 = scmp.eq.s32.totalorder %s16, 0
      %p78 = por %p76, %p77
      %p79 = scmp.ne.s32.totalorder %s71, %s73
      %p80 = scmp.eq.s32.totalorder %s21, 1
      %p81 = por %p79, %p80
      %p82 = scmp.ne.s32.totalorder %s73, %s74
      %p83 = scmp.eq.s32.totalorder %s21, 0
      %p84 = por %p82, %p83
      %p85 = scmp.ne.s32.totalorder %s73, %s74
      %p86 = scmp.eq.s32.totalorder %s22, 1
      %p87 = por %p85, %p86
      %p89 = scmp.ne.s32.totalorder %s74, %s88
      %p90 = scmp.eq.s32.totalorder %s22, 0
      %p91 = por %p89, %p90
      %s93 = sadd.s32 %s92, 1
      %p96 = scmp.eq.s32.totalorder %s16, 1
      %p97 = scmp.ne.s32.totalorder %s92, %s94
      %p98 = scmp.eq.s32.totalorder %s16, 0
      %p99 = por %p97, %p98
      %p100 = scmp.ne.s32.totalorder %s92, %s94
      %p101 = scmp.eq.s32.totalorder %s21, 1
      %p102 = por %p100, %p101
      %p103 = scmp.ne.s32.totalorder %s94, %s95
      %p104 = scmp.eq.s32.totalorder %s21, 0
      %p105 = por %p103, %p104
      %p106 = scmp.ne.s32.totalorder %s94, %s95
      %p107 = scmp.eq.s32.totalorder %s22, 1
      %p108 = por %p106, %p107
      %p110 = scmp.ne.s32.totalorder %s95, %s109
      %p111 = scmp.eq.s32.totalorder %s22, 0
      %p112 = por %p110, %p111
      %s114 = sadd.s32 %s113, 1
      %p117 = scmp.eq.s32.totalorder %s16, 1
      %p118 = scmp.ne.s32.totalorder %s113, %s115
      %p119 = scmp.eq.s32.totalorder %s16, 0
      %p120 = por %p118, %p119
      %p121 = scmp.ne.s32.totalorder %s113, %s115
      %p122 = scmp.eq.s32.totalorder %s21, 1
      %p123 = por %p121, %p122
      %p124 = scmp.ne.s32.totalorder %s115, %s116
      %p125 = scmp.eq.s32.totalorder %s21, 0
      %p126 = por %p124, %p125
      %p127 = scmp.ne.s32.totalorder %s115, %s116
      %p128 = scmp.eq.s32.totalorder %s22, 1
      %p129 = por %p127, %p128
      %p131 = scmp.ne.s32.totalorder %s116, %s130
      %p132 = scmp.eq.s32.totalorder %s22, 0
      %p133 = por %p131, %p132
      %s135 = sadd.s32 %s134, 1
      %p138 = scmp.eq.s32.totalorder %s16, 1
      %p139 = scmp.ne.s32.totalorder %s134, %s136
      %p140 = scmp.eq.s32.totalorder %s16, 0
      %p141 = por %p139, %p140
      %p142 = scmp.ne.s32.totalorder %s134, %s136
      %p143 = scmp.eq.s32.totalorder %s21, 1
      %p144 = por %p142, %p143
      %p145 = scmp.ne.s32.totalorder %s136, %s137
      %p146 = scmp.eq.s32.totalorder %s21, 0
      %p147 = por %p145, %p146
      %p148 = scmp.ne.s32.totalorder %s136, %s137
      %p149 = scmp.eq.s32.totalorder %s22, 1
      %p150 = por %p148, %p149
      %p152 = scmp.ne.s32.totalorder %s137, %s151
      %p153 = scmp.eq.s32.totalorder %s22, 0
      %p154 = por %p152, %p153
      %s156 = sadd.s32 %s155, 1
      %p159 = scmp.eq.s32.totalorder %s16, 1
      %p160 = scmp.ne.s32.totalorder %s155, %s157
      %p161 = scmp.eq.s32.totalorder %s16, 0
      %p162 = por %p160, %p161
      %p163 = scmp.ne.s32.totalorder %s155, %s157
      %p164 = scmp.eq.s32.totalorder %s21, 1
      %p165 = por %p163, %p164
      %p166 = scmp.ne.s32.totalorder %s157, %s158
      %p167 = scmp.eq.s32.totalorder %s21, 0
      %p168 = por %p166, %p167
      %p169 = scmp.ne.s32.totalorder %s157, %s158
      %p170 = scmp.eq.s32.totalorder %s22, 1
      %p171 = por %p169, %p170
      %p173 = scmp.ne.s32.totalorder %s158, %s172
      %p174 = scmp.eq.s32.totalorder %s22, 0
      %p175 = por %p173, %p174
      %s176 = ssub.s32 %s16, %s23
      %p177 = scmp.eq.s32.totalorder %s176, 0
      %s179 = sadd.s32 %s178, 1
      %s180 = scalar_select %p177, %s178, %s179
      %p183 = pneg %p177
      %p184 = scmp.eq.s32.totalorder %s16, 1
      %p185 = por %p183, %p184
      %p186 = scmp.ne.s32.totalorder %s178, %s181
      %p187 = scmp.eq.s32.totalorder %s16, 0
      %p188 = por %p186, %p187
      %p189 = scmp.ne.s32.totalorder %s178, %s181
      %p190 = scmp.eq.s32.totalorder %s21, 1
      %p191 = por %p189, %p190
      %p192 = scmp.ne.s32.totalorder %s181, %s182
      %p193 = scmp.eq.s32.totalorder %s21, 0
      %p194 = por %p192, %p193
      %p195 = scmp.ne.s32.totalorder %s181, %s182
      %p196 = scmp.eq.s32.totalorder %s22, 1
      %p197 = por %p195, %p196
      %p199 = scmp.ne.s32.totalorder %s182, %s198
      %p200 = scmp.eq.s32.totalorder %s22, 0
      %p201 = por %p199, %p200
      %p202 = scmp.le.s32.totalorder 1, %s16
      %p203 = scmp.lt.s32.totalorder %s16, 3
      %p204 = pnand %p202, %p203
      %p205 = pneg %p204
      // Predicated region
      $region9: #{tpu_custom_call.1} parent=5 // pred_check
        _
      $region10: #{tpu_custom_call.1} parent=5 // pred_check_branch
        %207 = sbr.rel (%p204) target = $region12
      $region11: #{tpu_custom_call.1} parent=5 // pred_region
        %s208 = ssub.s32 %s16, 1
        // Predicated region
        $region13: #{tpu_custom_call.1} parent=11 // pred_check
          %p209 = pneg %p63
        $region14: #{tpu_custom_call.1} parent=11 // pred_check_branch
          %211 = sbr.rel (%p209) target = $region16
        $region15: #{tpu_custom_call.1} parent=11 // pred_region
          _
        $region16: #{tpu_custom_call.1} parent=11 // pred_fallthru
          _
        // Predicated region
        $region17: #{tpu_custom_call.1} parent=11 // pred_check
          %p212 = pneg %p84
        $region18: #{tpu_custom_call.1} parent=11 // pred_check_branch
          %214 = sbr.rel (%p212) target = $region20
        $region19: #{tpu_custom_call.1} parent=11 // pred_region
          _
        $region20: #{tpu_custom_call.1} parent=11 // pred_fallthru
          _
        // Predicated region
        $region21: #{tpu_custom_call.1} parent=11 // pred_check
          %p215 = pneg %p105
        $region22: #{tpu_custom_call.1} parent=11 // pred_check_branch
          %217 = sbr.rel (%p215) target = $region24
        $region23: #{tpu_custom_call.1} parent=11 // pred_region
          _
        $region24: #{tpu_custom_call.1} parent=11 // pred_fallthru
          _
        // Predicated region
        $region25: #{tpu_custom_call.1} parent=11 // pred_check
          %p218 = pneg %p126
        $region26: #{tpu_custom_call.1} parent=11 // pred_check_branch
          %220 = sbr.rel (%p218) target = $region28
        $region27: #{tpu_custom_call.1} parent=11 // pred_region
          _
        $region28: #{tpu_custom_call.1} parent=11 // pred_fallthru
          _
        // Predicated region
        $region29: #{tpu_custom_call.1} parent=11 // pred_check
          %p221 = pneg %p147
        $region30: #{tpu_custom_call.1} parent=11 // pred_check_branch
          %223 = sbr.rel (%p221) target = $region32
        $region31: #{tpu_custom_call.1} parent=11 // pred_region
          _
        $region32: #{tpu_custom_call.1} parent=11 // pred_fallthru
          _
        // Predicated region
        $region33: #{tpu_custom_call.1} parent=11 // pred_check
          %p224 = pneg %p168
        $region34: #{tpu_custom_call.1} parent=11 // pred_check_branch
          %226 = sbr.rel (%p224) target = $region36
        $region35: #{tpu_custom_call.1} parent=11 // pred_region
          _
        $region36: #{tpu_custom_call.1} parent=11 // pred_fallthru
          _
      $region12: #{tpu_custom_call.1} parent=5 // pred_fallthru
        _
      %p227 = scmp.lt.s32.totalorder %s16, 2
      // Predicated region
      $region37: #{tpu_custom_call.1} parent=5 // pred_check
        %p228 = pneg %p227
      $region38: #{tpu_custom_call.1} parent=5 // pred_check_branch
        %230 = sbr.rel (%p228) target = $region40
      $region39: #{tpu_custom_call.1} parent=5 // pred_region
        // Predicated region
        $region41: #{tpu_custom_call.1} parent=39 // pred_check
          %p231 = pneg %p36
        $region42: #{tpu_custom_call.1} parent=39 // pred_check_branch
          %233 = sbr.rel (%p231) target = $region44
        $region43: #{tpu_custom_call.1} parent=39 // pred_region
          %p234 = scmp.lt.s32.totalorder %s16, 1
          %s235 = scalar_select %p234, %s16, 1
          %s236 = smul.addr %s235, 2
          %s237 = smul.addr %s236, 4
          %s238 = scalar_lea.vmem %s0, %s237
        $region44: #{tpu_custom_call.1} parent=39 // pred_fallthru
          _
      $region40: #{tpu_custom_call.1} parent=5 // pred_fallthru
        _
      %p239 = scmp.le.s32.totalorder 1, %s16
      %p240 = scmp.lt.s32.totalorder %s16, 3
      %p241 = pnand %p239, %p240
      %p242 = pneg %p241
      // Predicated region
      $region45: #{tpu_custom_call.1} parent=5 // pred_check
        _
      $region46: #{tpu_custom_call.1} parent=5 // pred_check_branch
        %244 = sbr.rel (%p241) target = $region48
      $region47: #{tpu_custom_call.1} parent=5 // pred_region
        %s245 = ssub.s32 %s16, 1
        %p246 = scmp.lt.s32.totalorder %s21, 1
        %s247 = scalar_select %p246, %s21, 1
        %s248 = smul.addr %s247, 2
        %s249 = smul.addr %s248, 4
        %s250 = scalar_lea.vmem %s0, %s249
        %p251 = pneg %p42
        %p252 = pneg %p39
        %p253 = pneg %p63
        %p254 = pneg %p60
        %p255 = pneg %p84
        %p256 = pneg %p81
        %p257 = pneg %p105
        %p258 = pneg %p102
        %p259 = pneg %p126
        %p260 = pneg %p123
        %p261 = pneg %p147
        %p262 = pneg %p144
        %p263 = pneg %p168
        %p264 = pneg %p165
        %p265 = pneg %p194
        %p266 = pneg %p191
        %s267 = sand.u32 %s181, 1
        %s268 = scalar_lea.sflag [#allocation3], %s267
        %s269 = sand.u32 %s181, 1
        %s270 = smul.addr %s269, 64
        %s271 = scalar_lea.vmem [#allocation2], %s270
        %p272 = scmp.lt.s32.totalorder %s21, 1
        %s273 = scalar_select %p272, %s21, 1
        %s274 = smul.addr %s273, 2
        %s275 = smul.addr %s274, 4
        %s276 = scalar_lea.vmem %s0, %s275
        %v277 = vld [vmem:[%s276] sm:$0xff]
        %v278 = vld [vmem:[%s6] sm:$0x3]
        %v280 = vcombine.high %v277, %v277
        %vm282 = vcmp.ge.f32.partialorder %v278, 1.0
        %v283 = vsel %vm282, 1, 0
        %v284 = vlaneseq
        %v285 = vshrl.u32 %v284, 7
        %v286 = vsub.s32 0, %v285
        %v287 = vrot.slane %v283, %v286
        %v288 = vlaneseq
        %v289 = vshrl.u32 %v288, 7
        %v290 = vsub.s32 1, %v289
        %v291 = vrot.slane %v283, %v290
        %vm292 = vcmp.eq.s32.totalorder %v287, 1
        %vm293 = vcmp.eq.s32.totalorder %v291, 1
        %295 = vrot.lane.b32.xlu0 -inf, 17
        %v296 = vpop.permute.xlu0 %295
        %297 = vrot.lane.b32.xlu0 %v277, 17
        %v298 = vpop.permute.xlu0 %297
        %299 = vrot.lane.b32.xlu0 %v280, 17
        %v300 = vpop.permute.xlu0 %299
        %vm301 = vcmask 138240
        %v302 = vsel %vm301, %v296, %v298
        %v303 = vsel %vm301, %v298, %v300
        %v306 = vsel %vm292, %v302, -inf
        %v307 = vsel %vm293, %v303, -inf
        %vm308 = vcmp.lt.f32.partialorder %v278, 15.0
        %v309 = vsel %vm308, 1, 0
        %v310 = vlaneseq
        %v311 = vshrl.u32 %v310, 7
        %v312 = vsub.s32 0, %v311
        %v313 = vrot.slane %v309, %v312
        %v314 = vlaneseq
        %v315 = vshrl.u32 %v314, 7
        %v316 = vsub.s32 1, %v315
        %v317 = vrot.slane %v309, %v316
        %vm318 = vcmp.eq.s32.totalorder %v313, 1
        %vm319 = vcmp.eq.s32.totalorder %v317, 1
        %320 = vrot.lane.b32.xlu0 -inf, 15
        %v321 = vpop.permute.xlu0 %320
        %322 = vrot.lane.b32.xlu0 %v277, 15
        %v323 = vpop.permute.xlu0 %322
        %324 = vrot.lane.b32.xlu0 %v280, 15
        %v325 = vpop.permute.xlu0 %324
        %vm326 = vcmask 121856
        %v327 = vsel %vm326, %v321, %v323
        %v328 = vsel %vm326, %v323, %v325
        %v331 = vsel %vm318, %v327, -inf
        %v332 = vsel %vm319, %v328, -inf
        %333 = vrot.lane.b32.xlu0 -inf, 1
        %v334 = vpop.permute.xlu0 %333
        %335 = vrot.lane.b32.xlu0 %v277, 1
        %v336 = vpop.permute.xlu0 %335
        %337 = vrot.lane.b32.xlu0 %v280, 1
        %v338 = vpop.permute.xlu0 %337
        %vm339 = vcmask 7168
        %v340 = vsel %vm339, %v334, %v336
        %v341 = vsel %vm339, %v336, %v338
        %v344 = vsel %vm292, %v340, -inf
        %v345 = vsel %vm293, %v341, -inf
        %346 = vrot.lane.b32.xlu0 %v277, 127
        %v347 = vpop.permute.xlu0 %346
        %348 = vrot.lane.b32.xlu0 %v280, 127
        %v349 = vpop.permute.xlu0 %348
        %350 = vrot.lane.b32.xlu0 -inf, 127
        %v351 = vpop.permute.xlu0 %350
        %vm352 = vcmask 1039360
        %v353 = vsel %vm352, %v347, %v349
        %v354 = vsel %vm352, %v349, %v351
        %v357 = vsel %vm318, %v353, -inf
        %v358 = vsel %vm319, %v354, -inf
        %359 = vrot.lane.b32.xlu0 %v277, 113
        %v360 = vpop.permute.xlu0 %359
        %361 = vrot.lane.b32.xlu0 %v280, 113
        %v362 = vpop.permute.xlu0 %361
        %363 = vrot.lane.b32.xlu0 -inf, 113
        %v364 = vpop.permute.xlu0 %363
        %vm365 = vcmask 924672
        %v366 = vsel %vm365, %v360, %v362
        %v367 = vsel %vm365, %v362, %v364
        %v370 = vsel %vm292, %v366, -inf
        %v371 = vsel %vm293, %v367, -inf
        %372 = vrot.lane.b32.xlu0 %v277, 111
        %v373 = vpop.permute.xlu0 %372
        %374 = vrot.lane.b32.xlu0 %v280, 111
        %v375 = vpop.permute.xlu0 %374
        %376 = vrot.lane.b32.xlu0 -inf, 111
        %v377 = vpop.permute.xlu0 %376
        %vm378 = vcmask 908288
        %v379 = vsel %vm378, %v373, %v375
        %v380 = vsel %vm378, %v375, %v377
        %v383 = vsel %vm318, %v379, -inf
        %v384 = vsel %vm319, %v380, -inf
        %385 = vrot.lane.b32.xlu0 -inf, 16
        %v386 = vpop.permute.xlu0 %385
        %387 = vrot.lane.b32.xlu0 %v277, 16
        %v388 = vpop.permute.xlu0 %387
        %389 = vrot.lane.b32.xlu0 %v280, 16
        %v390 = vpop.permute.xlu0 %389
        %vm391 = vcmask 130048
        %v392 = vsel %vm391, %v386, %v388
        %v393 = vsel %vm391, %v388, %v390
        %v396 = vmax.f32 %v306, %v392
        %v397 = vmax.f32 %v307, %v393
        %v398 = vmax.f32 %v396, %v331
        %v399 = vmax.f32 %v397, %v332
        %v400 = vmax.f32 %v398, %v344
        %v401 = vmax.f32 %v399, %v345
        %v402 = vmax.f32 %v400, %v277
        %v403 = vmax.f32 %v401, %v280
        %v404 = vmax.f32 %v402, %v357
        %v405 = vmax.f32 %v403, %v358
        %v406 = vmax.f32 %v404, %v370
        %v407 = vmax.f32 %v405, %v371
        %408 = vrot.lane.b32.xlu0 %v277, 112
        %v409 = vpop.permute.xlu0 %408
        %410 = vrot.lane.b32.xlu0 %v280, 112
        %v411 = vpop.permute.xlu0 %410
        %412 = vrot.lane.b32.xlu0 -inf, 112
        %v413 = vpop.permute.xlu0 %412
        %vm414 = vcmask 916480
        %v415 = vsel %vm414, %v409, %v411
        %v416 = vsel %vm414, %v411, %v413
        %v419 = vmax.f32 %v406, %v415
        %v420 = vmax.f32 %v407, %v416
        %v421 = vmax.f32 %v419, %v383
        %v422 = vmax.f32 %v420, %v384
        %v423 = vld [vmem:[%s1] sm:$0xff]
        %v424 = vld [vmem:[%s1 + $0x8] sm:$0xff]
        %v425 = vld [vmem:[%s1 + $0x10] sm:$0xff]
        %v426 = vld [vmem:[%s2] sm:$0xff]
        %v427 = vld [vmem:[%s2 + $0x8] sm:$0xff]
        %v428 = vld [vmem:[%s2 + $0x10] sm:$0xff]
        %vm429 = vcmask 31744
        %v431 = vsel %vm429, %v426, 0
        %v434 = vsel %vm429, %v427, 0
        %v437 = vsel %vm429, %v428, 0
        %vm439 = vcmask 1043456
        %v441 = vsel %vm439, %v421, 0
        %v444 = vsel %vm439, %v422, 0
        %446 = vmatprep.subr.mxu0 %v444
        %447 = vmatpush1.msra.mxu0 %v441
        %448 = vmatprep.subr.mxu0 0.0
        %449 = vmatpush1.msra.mxu0 0.0
        %450 = vmatprep.subr.mxu0 0.0
        %451 = vmatpush1.msra.mxu0 0.0
        %452 = vmatprep.subr.mxu0 0.0
        %453 = vmatpush1.msra.mxu0 0.0
        %454 = vmatprep.subr.mxu0 0.0
        %455 = vmatpush1.msra.mxu0 0.0
        %456 = vmatprep.subr.mxu0 0.0
        %457 = vmatpush1.msra.mxu0 0.0
        %458 = vmatprep.subr.mxu0 0.0
        %459 = vmatpush1.msra.mxu0 0.0
        %460 = vmatprep.subr.mxu0 0.0
        %461 = vmatpush1.msra.mxu0 0.0
        %462 = vmatprep.subr.mxu0 0.0
        %463 = vmatpush1.msra.mxu0 0.0
        %464 = vmatprep.subr.mxu0 0.0
        %465 = vmatpush1.msra.mxu0 0.0
        %466 = vmatprep.subr.mxu0 0.0
        %467 = vmatpush1.msra.mxu0 0.0
        %468 = vmatprep.subr.mxu0 0.0
        %469 = vmatpush1.msra.mxu0 0.0
        %470 = vmatprep.subr.mxu0 0.0
        %471 = vmatpush1.msra.mxu0 0.0
        %472 = vmatprep.subr.mxu0 0.0
        %473 = vmatpush1.msra.mxu0 0.0
        %474 = vmatprep.subr.mxu0 0.0
        %475 = vmatpush1.msra.mxu0 0.0
        %476 = vmatprep.subr.mxu0 0.0
        %477 = vmatpush1.msra.mxu0 0.0
        %478 = vmatprep.subr.mxu0 0.0
        %479 = vmatpush1.msra.mxu0 0.0
        %480 = vmatprep.subr.mxu0 0.0
        %481 = vmatpush1.msra.mxu0 0.0
        %482 = vmatprep.subr.mxu0 0.0
        %483 = vmatpush1.msra.mxu0 0.0
        %484 = vmatprep.subr.mxu0 0.0
        %485 = vmatpush1.msra.mxu0 0.0
        %486 = vmatprep.subr.mxu0 0.0
        %487 = vmatpush1.msra.mxu0 0.0
        %488 = vmatprep.subr.mxu0 0.0
        %489 = vmatpush1.msra.mxu0 0.0
        %490 = vmatprep.subr.mxu0 0.0
        %491 = vmatpush1.msra.mxu0 0.0
        %492 = vmatprep.subr.mxu0 0.0
        %493 = vmatpush1.msra.mxu0 0.0
        %494 = vmatprep.subr.mxu0 0.0
        %495 = vmatpush1.msra.mxu0 0.0
        %496 = vmatprep.subr.mxu0 0.0
        %497 = vmatpush1.msra.mxu0 0.0
        %498 = vmatprep.subr.mxu0 0.0
        %499 = vmatpush1.msra.mxu0 0.0
        %500 = vmatprep.subr.mxu0 0.0
        %501 = vmatpush1.msra.mxu0 0.0
        %502 = vmatprep.subr.mxu0 0.0
        %503 = vmatpush1.msra.mxu0 0.0
        %504 = vmatprep.subr.mxu0 0.0
        %505 = vmatpush1.msra.mxu0 0.0
        %506 = vmatprep.subr.mxu0 0.0
        %507 = vmatpush1.msra.mxu0 0.0
        %508 = vmatprep.subr.mxu0 0.0
        %509 = vmatpush1.msra.mxu0 0.0
        %510 = vmatprep.mubr.f32.mxu0 0.0
        %511 = vmatmul.mubr.f32.gmra.mrb[0].mxu0 %v431
        %v512 = vpop.f32.mrb[0].mxu0
        %v513 = vadd.f32 0.0, %v512
        %v514 = vpop.f32.mrb[0].mxu0
        %v515 = vadd.f32 0.0, %v514
        %516 = vmatprep.mubr.f32.mxu0 0.0
        %517 = vmatmul.mubr.f32.gmra.mrb[0].mxu0 %v434
        %v518 = vpop.f32.mrb[0].mxu0
        %v519 = vadd.f32 0.0, %v518
        %v520 = vpop.f32.mrb[0].mxu0
        %v521 = vadd.f32 0.0, %v520
        %522 = vmatprep.mubr.f32.mxu0 0.0
        %523 = vmatmul.mubr.f32.gmra.mrb[0].mxu0 %v437
        %v524 = vpop.f32.mrb[0].mxu0
        %v525 = vadd.f32 0.0, %v524
        %v526 = vpop.f32.mrb[0].mxu0
        %v527 = vadd.f32 0.0, %v526
        %528 = vdwg.mxu0
        %v530 = vsel %vm429, %v423, 0
        %v533 = vsel %vm429, %v424, 0
        %v536 = vsel %vm429, %v425, 0
        %v538 = vsel %vm439, %v277, 0
        %v540 = vsel %vm439, %v280, 0
        %542 = vmatprep.subr.mxu0 %v540
        %543 = vmatpush1.msra.mxu0 %v538
        %544 = vmatprep.subr.mxu0 0.0
        %545 = vmatpush1.msra.mxu0 0.0
        %546 = vmatprep.subr.mxu0 0.0
        %547 = vmatpush1.msra.mxu0 0.0
        %548 = vmatprep.subr.mxu0 0.0
        %549 = vmatpush1.msra.mxu0 0.0
        %550 = vmatprep.subr.mxu0 0.0
        %551 = vmatpush1.msra.mxu0 0.0
        %552 = vmatprep.subr.mxu0 0.0
        %553 = vmatpush1.msra.mxu0 0.0
        %554 = vmatprep.subr.mxu0 0.0
        %555 = vmatpush1.msra.mxu0 0.0
        %556 = vmatprep.subr.mxu0 0.0
        %557 = vmatpush1.msra.mxu0 0.0
        %558 = vmatprep.subr.mxu0 0.0
        %559 = vmatpush1.msra.mxu0 0.0
        %560 = vmatprep.subr.mxu0 0.0
        %561 = vmatpush1.msra.mxu0 0.0
        %562 = vmatprep.subr.mxu0 0.0
        %563 = vmatpush1.msra.mxu0 0.0
        %564 = vmatprep.subr.mxu0 0.0
        %565 = vmatpush1.msra.mxu0 0.0
        %566 = vmatprep.subr.mxu0 0.0
        %567 = vmatpush1.msra.mxu0 0.0
        %568 = vmatprep.subr.mxu0 0.0
        %569 = vmatpush1.msra.mxu0 0.0
        %570 = vmatprep.subr.mxu0 0.0
        %571 = vmatpush1.msra.mxu0 0.0
        %572 = vmatprep.subr.mxu0 0.0
        %573 = vmatpush1.msra.mxu0 0.0
        %574 = vmatprep.subr.mxu0 0.0
        %575 = vmatpush1.msra.mxu0 0.0
        %576 = vmatprep.subr.mxu0 0.0
        %577 = vmatpush1.msra.mxu0 0.0
        %578 = vmatprep.subr.mxu0 0.0
        %579 = vmatpush1.msra.mxu0 0.0
        %580 = vmatprep.subr.mxu0 0.0
        %581 = vmatpush1.msra.mxu0 0.0
        %582 = vmatprep.subr.mxu0 0.0
        %583 = vmatpush1.msra.mxu0 0.0
        %584 = vmatprep.subr.mxu0 0.0
        %585 = vmatpush1.msra.mxu0 0.0
        %586 = vmatprep.subr.mxu0 0.0
        %587 = vmatpush1.msra.mxu0 0.0
        %588 = vmatprep.subr.mxu0 0.0
        %589 = vmatpush1.msra.mxu0 0.0
        %590 = vmatprep.subr.mxu0 0.0
        %591 = vmatpush1.msra.mxu0 0.0
        %592 = vmatprep.subr.mxu0 0.0
        %593 = vmatpush1.msra.mxu0 0.0
        %594 = vmatprep.subr.mxu0 0.0
        %595 = vmatpush1.msra.mxu0 0.0
        %596 = vmatprep.subr.mxu0 0.0
        %597 = vmatpush1.msra.mxu0 0.0
        %598 = vmatprep.subr.mxu0 0.0
        %599 = vmatpush1.msra.mxu0 0.0
        %600 = vmatprep.subr.mxu0 0.0
        %601 = vmatpush1.msra.mxu0 0.0
        %602 = vmatprep.subr.mxu0 0.0
        %603 = vmatpush1.msra.mxu0 0.0
        %604 = vmatprep.subr.mxu0 0.0
        %605 = vmatpush1.msra.mxu0 0.0
        %606 = vmatprep.mubr.f32.mxu0 0.0
        %607 = vmatmul.mubr.f32.gmra.mrb[0].mxu0 %v530
        %v608 = vpop.f32.mrb[0].mxu0
        %v609 = vadd.f32 %v513, %v608
        %v610 = vpop.f32.mrb[0].mxu0
        %v611 = vadd.f32 %v515, %v610
        %612 = vmatprep.mubr.f32.mxu0 0.0
        %613 = vmatmul.mubr.f32.gmra.mrb[0].mxu0 %v533
        %v614 = vpop.f32.mrb[0].mxu0
        %v615 = vadd.f32 %v519, %v614
        %v616 = vpop.f32.mrb[0].mxu0
        %v617 = vadd.f32 %v521, %v616
        %618 = vmatprep.mubr.f32.mxu0 0.0
        %619 = vmatmul.mubr.f32.gmra.mrb[0].mxu0 %v536
        %v620 = vpop.f32.mrb[0].mxu0
        %v621 = vadd.f32 %v525, %v620
        %v622 = vpop.f32.mrb[0].mxu0
        %v623 = vadd.f32 %v527, %v622
        %624 = vdwg.mxu0
        %v625 = vld [vmem:[%s3] sm:$0xff]
        %v626 = vld [vmem:[%s3 + $0x8] sm:$0xff]
        %v627 = vld [vmem:[%s3 + $0x10] sm:$0xff]
        %629 = vset.pattern.permute.xlu0 0
        %630 = vperm.xlu0 %629, %v625
        %v631 = vpop.permute.xlu0 %630
        %634 = vset.pattern.permute.xlu0 0
        %635 = vperm.xlu0 %634, %v626
        %v636 = vpop.permute.xlu0 %635
        %639 = vset.pattern.permute.xlu0 0
        %640 = vperm.xlu0 %639, %v627
        %v641 = vpop.permute.xlu0 %640
        %v643 = vadd.f32 %v609, %v631
        %v644 = vadd.f32 %v611, %v631
        %v645 = vadd.f32 %v615, %v636
        %v646 = vadd.f32 %v617, %v636
        %v647 = vadd.f32 %v621, %v641
        %v648 = vadd.f32 %v623, %v641
        %v649 = vmax.f32 %v643, 0.0
        %v650 = vmax.f32 %v644, 0.0
        %v651 = vmax.f32 %v645, 0.0
        %v652 = vmax.f32 %v646, 0.0
        %v653 = vmax.f32 %v647, 0.0
        %v654 = vmax.f32 %v648, 0.0
        %658 = vrot.lane.b32.xlu0 0.0, 17
        %v659 = vpop.permute.xlu0 %658
        %660 = vrot.lane.b32.xlu0 %v651, 17
        %v661 = vpop.permute.xlu0 %660
        %662 = vrot.lane.b32.xlu0 %v652, 17
        %v663 = vpop.permute.xlu0 %662
        %v664 = vsel %vm301, %v659, %v661
        %v665 = vsel %vm301, %v661, %v663
        %v668 = vsel %vm292, %v664, 0.0
        %v669 = vsel %vm293, %v665, 0.0
        %670 = vrot.lane.b32.xlu0 0.0, 15
        %v671 = vpop.permute.xlu0 %670
        %672 = vrot.lane.b32.xlu0 %v651, 15
        %v673 = vpop.permute.xlu0 %672
        %674 = vrot.lane.b32.xlu0 %v652, 15
        %v675 = vpop.permute.xlu0 %674
        %v676 = vsel %vm326, %v671, %v673
        %v677 = vsel %vm326, %v673, %v675
        %v680 = vsel %vm318, %v676, 0.0
        %v681 = vsel %vm319, %v677, 0.0
        %682 = vrot.lane.b32.xlu0 0.0, 1
        %v683 = vpop.permute.xlu0 %682
        %684 = vrot.lane.b32.xlu0 %v651, 1
        %v685 = vpop.permute.xlu0 %684
        %686 = vrot.lane.b32.xlu0 %v652, 1
        %v687 = vpop.permute.xlu0 %686
        %v688 = vsel %vm339, %v683, %v685
        %v689 = vsel %vm339, %v685, %v687
        %v692 = vsel %vm292, %v688, 0.0
        %v693 = vsel %vm293, %v689, 0.0
        %694 = vrot.lane.b32.xlu0 %v651, 127
        %v695 = vpop.permute.xlu0 %694
        %696 = vrot.lane.b32.xlu0 %v652, 127
        %v697 = vpop.permute.xlu0 %696
        %698 = vrot.lane.b32.xlu0 0.0, 127
        %v699 = vpop.permute.xlu0 %698
        %v700 = vsel %vm352, %v695, %v697
        %v701 = vsel %vm352, %v697, %v699
        %v704 = vsel %vm318, %v700, 0.0
        %v705 = vsel %vm319, %v701, 0.0
        %706 = vrot.lane.b32.xlu0 %v651, 113
        %v707 = vpop.permute.xlu0 %706
        %708 = vrot.lane.b32.xlu0 %v652, 113
        %v709 = vpop.permute.xlu0 %708
        %710 = vrot.lane.b32.xlu0 0.0, 113
        %v711 = vpop.permute.xlu0 %710
        %v712 = vsel %vm365, %v707, %v709
        %v713 = vsel %vm365, %v709, %v711
        %v716 = vsel %vm292, %v712, 0.0
        %v717 = vsel %vm293, %v713, 0.0
        %718 = vrot.lane.b32.xlu0 %v651, 111
        %v719 = vpop.permute.xlu0 %718
        %720 = vrot.lane.b32.xlu0 %v652, 111
        %v721 = vpop.permute.xlu0 %720
        %722 = vrot.lane.b32.xlu0 0.0, 111
        %v723 = vpop.permute.xlu0 %722
        %v724 = vsel %vm378, %v719, %v721
        %v725 = vsel %vm378, %v721, %v723
        %v728 = vsel %vm318, %v724, 0.0
        %v729 = vsel %vm319, %v725, 0.0
        %730 = vrot.lane.b32.xlu0 0.0, 16
        %v731 = vpop.permute.xlu0 %730
        %732 = vrot.lane.b32.xlu0 %v651, 16
        %v733 = vpop.permute.xlu0 %732
        %734 = vrot.lane.b32.xlu0 %v652, 16
        %v735 = vpop.permute.xlu0 %734
        %v736 = vsel %vm391, %v731, %v733
        %v737 = vsel %vm391, %v733, %v735
        %740 = vrot.lane.b32.xlu0 %v651, 112
        %v741 = vpop.permute.xlu0 %740
        %742 = vrot.lane.b32.xlu0 %v652, 112
        %v743 = vpop.permute.xlu0 %742
        %744 = vrot.lane.b32.xlu0 0.0, 112
        %v745 = vpop.permute.xlu0 %744
        %v746 = vsel %vm414, %v741, %v743
        %v747 = vsel %vm414, %v743, %v745
        %v750 = vld [vmem:[%s4] sm:$0xff]
        %v751 = vld [vmem:[%s4 + $0x8] sm:$0xff]
        %v752 = vld [vmem:[%s5] sm:$0xff]
        %v753 = vld [vmem:[%s5 + $0x8] sm:$0xff]
        %755 = vset.pattern.permute.xlu0 0
        %756 = vperm.xlu0 %755, %v752
        %v757 = vpop.permute.xlu0 %756
        %760 = vset.pattern.permute.xlu0 0
        %761 = vperm.xlu0 %760, %v753
        %v762 = vpop.permute.xlu0 %761
        %vm764 = vcmask 588800
        %v766 = vsel %vm764, %v750, 0
        %v769 = vsel %vm764, %v751, 0
        %771 = vmatprep.subr.mxu0 %v669
        %772 = vmatpush1.msra.mxu0 %v668
        %773 = vmatprep.subr.mxu0 %v737
        %774 = vmatpush1.msra.mxu0 %v736
        %775 = vmatprep.subr.mxu0 %v681
        %776 = vmatpush1.msra.mxu0 %v680
        %777 = vmatprep.subr.mxu0 %v693
        %778 = vmatpush1.msra.mxu0 %v692
        %779 = vmatprep.subr.mxu0 %v652
        %780 = vmatpush1.msra.mxu0 %v651
        %781 = vmatprep.subr.mxu0 %v705
        %782 = vmatpush1.msra.mxu0 %v704
        %783 = vmatprep.subr.mxu0 %v717
        %784 = vmatpush1.msra.mxu0 %v716
        %785 = vmatprep.subr.mxu0 %v747
        %786 = vmatpush1.msra.mxu0 %v746
        %787 = vmatprep.subr.mxu0 %v729
        %788 = vmatpush1.msra.mxu0 %v728
        %789 = vmatprep.subr.mxu0 0.0
        %790 = vmatpush1.msra.mxu0 0.0
        %791 = vmatprep.subr.mxu0 0.0
        %792 = vmatpush1.msra.mxu0 0.0
        %793 = vmatprep.subr.mxu0 0.0
        %794 = vmatpush1.msra.mxu0 0.0
        %795 = vmatprep.subr.mxu0 0.0
        %796 = vmatpush1.msra.mxu0 0.0
        %797 = vmatprep.subr.mxu0 0.0
        %798 = vmatpush1.msra.mxu0 0.0
        %799 = vmatprep.subr.mxu0 0.0
        %800 = vmatpush1.msra.mxu0 0.0
        %801 = vmatprep.subr.mxu0 0.0
        %802 = vmatpush1.msra.mxu0 0.0
        %803 = vmatprep.subr.mxu0 0.0
        %804 = vmatpush1.msra.mxu0 0.0
        %805 = vmatprep.subr.mxu0 0.0
        %806 = vmatpush1.msra.mxu0 0.0
        %807 = vmatprep.subr.mxu0 0.0
        %808 = vmatpush1.msra.mxu0 0.0
        %809 = vmatprep.subr.mxu0 0.0
        %810 = vmatpush1.msra.mxu0 0.0
        %811 = vmatprep.subr.mxu0 0.0
        %812 = vmatpush1.msra.mxu0 0.0
        %813 = vmatprep.subr.mxu0 0.0
        %814 = vmatpush1.msra.mxu0 0.0
        %815 = vmatprep.subr.mxu0 0.0
        %816 = vmatpush1.msra.mxu0 0.0
        %817 = vmatprep.subr.mxu0 0.0
        %818 = vmatpush1.msra.mxu0 0.0
        %819 = vmatprep.subr.mxu0 0.0
        %820 = vmatpush1.msra.mxu0 0.0
        %821 = vmatprep.subr.mxu0 0.0
        %822 = vmatpush1.msra.mxu0 0.0
        %823 = vmatprep.subr.mxu0 0.0
        %824 = vmatpush1.msra.mxu0 0.0
        %825 = vmatprep.subr.mxu0 0.0
        %826 = vmatpush1.msra.mxu0 0.0
        %827 = vmatprep.subr.mxu0 0.0
        %828 = vmatpush1.msra.mxu0 0.0
        %829 = vmatprep.subr.mxu0 0.0
        %830 = vmatpush1.msra.mxu0 0.0
        %831 = vmatprep.subr.mxu0 0.0
        %832 = vmatpush1.msra.mxu0 0.0
        %833 = vmatprep.subr.mxu0 0.0
        %834 = vmatpush1.msra.mxu0 0.0
        %835 = vmatprep.mubr.f32.mxu0 0.0
        %836 = vmatmul.mubr.f32.gmra.mrb[0].mxu0 %v766
        %v837 = vpop.f32.mrb[0].mxu0
        %v838 = vadd.f32 %v757, %v837
        %v839 = vpop.f32.mrb[0].mxu0
        %v840 = vadd.f32 %v757, %v839
        %841 = vmatprep.mubr.f32.mxu0 0.0
        %842 = vmatmul.mubr.f32.gmra.mrb[0].mxu0 %v769
        %v843 = vpop.f32.mrb[0].mxu0
        %v844 = vadd.f32 %v762, %v843
        %v845 = vpop.f32.mrb[0].mxu0
        %v846 = vadd.f32 %v762, %v845
        %847 = vdwg.mxu0
        %v848 = vmax.f32 %v838, 0.0
        %v849 = vmax.f32 %v840, 0.0
        %v850 = vmax.f32 %v844, 0.0
        %v851 = vmax.f32 %v846, 0.0
        %852 = vst [vmem:[%s271] sm:$0xff] %v649
        %853 = vst [vmem:[%s271 + $0x8] sm:$0xff] %v650
        %854 = vst [vmem:[%s271 + $0x10] sm:$0xff] %v848
        %855 = vst [vmem:[%s271 + $0x18] sm:$0xff] %v849
        %856 = vst [vmem:[%s271 + $0x20] sm:$0xff] %v850
        %857 = vst [vmem:[%s271 + $0x28] sm:$0xff] %v851
        %858 = vst [vmem:[%s271 + $0x30] sm:$0xff] %v653
        %859 = vst [vmem:[%s271 + $0x38] sm:$0xff] %v654
        %s860 = sand.u32 %s181, 1
        %s861 = scalar_lea.sflag [#allocation3], %s860
        %s862 = sand.u32 %s181, 1
        %s863 = smul.addr %s862, 64
        %s864 = scalar_lea.vmem [#allocation2], %s863
        // Predicated region
        $region49: #{tpu_custom_call.1} parent=47 // pred_check
          %p865 = pneg %p191
        $region50: #{tpu_custom_call.1} parent=47 // pred_check_branch
          %867 = sbr.rel (%p865) target = $region52
        $region51: #{tpu_custom_call.1} parent=47 // pred_region
          %s869 = ssub.s32 1024, 1024
          %870 = vsyncadd %s861, %s869
          %s871 = smul.addr %s21, 8
          %s872 = smul.addr %s871, 128
          %s873 = scalar_lea.hbm %s7, %s872
          %s874 = sshll.u32 %s864, 4
          %s875 = int_to_ptr.vmem [resolvable:$true] %s874
          %880 = dma.vmem_to_hbm [thread:$0]  %s875, 1024, %s873, %s861, 256, 256, 16
        $region52: #{tpu_custom_call.1} parent=47 // pred_fallthru
          _
      $region48: #{tpu_custom_call.1} parent=5 // pred_fallthru
        _
      %p881 = scmp.le.s32.totalorder 2, %s16
      // Predicated region
      $region53: #{tpu_custom_call.1} parent=5 // pred_check
        %p882 = pneg %p881
      $region54: #{tpu_custom_call.1} parent=5 // pred_check_branch
        %884 = sbr.rel (%p882) target = $region56
      $region55: #{tpu_custom_call.1} parent=5 // pred_region
        %s885 = ssub.s32 %s16, 2
        // Predicated region
        $region57: #{tpu_custom_call.1} parent=55 // pred_check
          %p886 = pneg %p197
        $region58: #{tpu_custom_call.1} parent=55 // pred_check_branch
          %888 = sbr.rel (%p886) target = $region60
        $region59: #{tpu_custom_call.1} parent=55 // pred_region
          %s889 = sand.u32 %s182, 1
          %s890 = scalar_lea.sflag [#allocation3], %s889
          %s891 = sand.u32 %s182, 1
          %s892 = smul.addr %s891, 64
          %s893 = scalar_lea.vmem [#allocation2], %s892
          %894 = dma.done %s890, 1024
        $region60: #{tpu_custom_call.1} parent=55 // pred_fallthru
          _
      $region56: #{tpu_custom_call.1} parent=5 // pred_fallthru
        _
    $region6: #{tpu_custom_call.1} parent=1 // loop_footer
      %s20 = sadd.s32 1, %s16
    $region7: #{tpu_custom_call.1} parent=1 // loop_footer_branch
      %15 = sbr.rel target = $region3
    $region8: #{tpu_custom_call.1} parent=1 // loop_exit
      _
    %895 = vsyncpa [#allocation3], 1
    %s896 = scalar_lea.sflag [#allocation3], 1
    %897 = vsyncpa %s896, 1

</llo_original>
